<compile_context>
chip_gen: v7x
topology: tpu7x:2x2x1
jax: 0.10.0
libtpu: 0.0.40
codegen_flags: <defaults>
</compile_context>

<pallas_src>
import functools

import jax
import jax.numpy as jnp
from jax.experimental import pallas as pl
from jax.experimental.pallas import tpu as pltpu

LANE = 128   # TPU lane width
IN_F = 22
H1 = 26
H2 = 25
OUT_F = 3


def fused_affine_kernel(x_ref, w_ref, b_ref, o_ref):
    # x_ref: (bb, 22)   true-width input tile
    # w_ref: (22, 128)  folded weight, zero-padded on N, resident across the grid
    # b_ref: (1, 128)   folded bias, zero-padded on N, resident
    # o_ref: (bb, 3)    true-width output tile
    acc = jnp.dot(x_ref[...], w_ref[...], preferred_element_type=jnp.float32)
    acc = acc + b_ref[...]
    o_ref[...] = acc[:, : o_ref.shape[-1]].astype(o_ref.dtype)


def prepare_params(params):
    """One-time fold of the 3 activation-free linears into a single affine map,
    plus static lane-padding of the weight/bias.  Call once, reuse every forward.
    (Valid only because the module has no nonlinearities between layers.)"""
    w1, b1, w2, b2, w3, b3 = params
    w_eff = w1 @ w2 @ w3                   # (22, 3)
    b_eff = (b1 @ w2 + b2) @ w3 + b3       # (1, 3)
    wp = jnp.zeros((IN_F, LANE), w_eff.dtype).at[:, :OUT_F].set(w_eff)
    bp = jnp.zeros((1, LANE), b_eff.dtype).at[:, :OUT_F].set(b_eff)
    return wp, bp


@functools.partial(jax.jit, static_argnames=("block_b",))
def neural_net_forward(x, wp, bp, *, block_b=4096):
    """Forward pass of NeuralNet as one Pallas kernel: out = x @ W_eff + b_eff."""
    B, in_f = x.shape

    if B <= block_b:
        # Whole batch as one block: block dims equal full array dims, so no
        # 8/128 divisibility or padding is needed, and there is exactly one
        # grid step (no pipeline prologue/epilogue overhead).
        bb, grid = B, 1
    else:
        # Large batch: 4096-row tiles (must stay a multiple of 8 sublanes).
        # A non-divisible final block is handled by Pallas output-write masking.
        bb, grid = block_b, pl.cdiv(B, block_b)

    return pl.pallas_call(
        fused_affine_kernel,
        out_shape=jax.ShapeDtypeStruct((B, OUT_F), jnp.float32),
        grid_spec=pltpu.PrefetchScalarGridSpec(
            num_scalar_prefetch=0,
            grid=(grid,),
            in_specs=[
                pl.BlockSpec((bb, in_f), lambda i: (i, 0)),    # batch-tiled x, true width
                pl.BlockSpec((IN_F, LANE), lambda i: (0, 0)),  # folded weight, resident
                pl.BlockSpec((1, LANE), lambda i: (0, 0)),     # folded bias, resident
            ],
            out_specs=pl.BlockSpec((bb, OUT_F), lambda i: (i, 0)),
        ),
        compiler_params=pltpu.CompilerParams(
            # Batch tiles are independent; only matters when grid > 1 (large B),
            # where it lets v7x shard tiles across both TensorCores.
            dimension_semantics=("parallel",),
        ),
    )(x, wp, bp)


def init_params(key):
    # Deterministic init mimicking PyTorch Linear default: U(-1/sqrt(fan_in), +1/sqrt(fan_in)).
    dims = [(IN_F, H1), (H1, H2), (H2, OUT_F)]
    params = []
    for fan_in, fan_out in dims:
        key, kw, kb = jax.random.split(key, 3)
        bound = 1.0 / jnp.sqrt(fan_in)
        w = jax.random.uniform(kw, (fan_in, fan_out), jnp.float32, -bound, bound)
        b = jax.random.uniform(kb, (1, fan_out), jnp.float32, -bound, bound)
        params.extend([w, b])
    return tuple(params)


if __name__ == "__main__":
    key = jax.random.PRNGKey(0)
    key, kx = jax.random.split(key)
    B = 64  # small batch: exercises the single-grid-step fast path
    x = jax.random.normal(kx, (B, IN_F), jnp.float32)

    params = init_params(key)
    wp, bp = prepare_params(params)   # folded + padded once, reused per call

    out = neural_net_forward(x, wp, bp)
    out = jax.block_until_ready(out)

    # Reference: 3 chained linear layers, no activation (matches the PyTorch module).
    w1, b1, w2, b2, w3, b3 = params
    ref = ((x @ w1 + b1) @ w2 + b2) @ w3 + b3
    assert out.shape == (B, OUT_F)
    # Folded-weight accumulation order differs slightly from the layer chain.
    assert jnp.allclose(out, ref, atol=1e-4, rtol=1e-4)

    print("KERNEL_OK")
</pallas_src>

<mosaic_0001>
module attributes {stable_mosaic.version = 11 : i64} {
  func.func @fused_affine_kernel(%arg0: i32, %arg1: memref<64x22xf32, #tpu.memory_space<vmem>>, %arg2: memref<22x128xf32, #tpu.memory_space<vmem>>, %arg3: memref<1x128xf32, #tpu.memory_space<vmem>>, %arg4: memref<64x3xf32, #tpu.memory_space<vmem>>) attributes {dimension_semantics = [#tpu.dimension_semantics<parallel>], iteration_bounds = array<i64: 1>, scalar_prefetch = 0 : i64, scratch_operands = 0 : i64, tpu.core_type = #tpu.core_type<tc>, window_params = [{transform_indices = @transform_0, window_bounds = array<i64: 64, 22>}, {pipeline_mode = #tpu.pipeline_mode<synchronous>, transform_indices = @transform_1, window_bounds = array<i64: 22, 128>}, {pipeline_mode = #tpu.pipeline_mode<synchronous>, transform_indices = @transform_2, window_bounds = array<i64: 1, 128>}, {transform_indices = @transform_3, window_bounds = array<i64: 64, 3>}]} {
    %c0 = arith.constant 0 : index
    %c0_0 = arith.constant 0 : index
    %0 = vector.load %arg1[%c0, %c0_0] : memref<64x22xf32, #tpu.memory_space<vmem>>, vector<64x22xf32>
    %c0_1 = arith.constant 0 : index
    %c0_2 = arith.constant 0 : index
    %1 = vector.load %arg2[%c0_1, %c0_2] : memref<22x128xf32, #tpu.memory_space<vmem>>, vector<22x128xf32>
    %cst = arith.constant dense<0.000000e+00> : vector<64x128xf32>
    %2 = tpu.matmul %0, %1, %cst {dimension_numbers = #tpu.dot_dimension_numbers<[1], [0], [0], [1], [0, 0, 1, 1], [], []>} : vector<64x22xf32>, vector<22x128xf32>, vector<64x128xf32> -> vector<64x128xf32>
    %c0_3 = arith.constant 0 : index
    %c0_4 = arith.constant 0 : index
    %3 = vector.load %arg3[%c0_3, %c0_4] : memref<1x128xf32, #tpu.memory_space<vmem>>, vector<1x128xf32>
    %4 = vector.broadcast %3 : vector<1x128xf32> to vector<64x128xf32>
    %5 = arith.addf %2, %4 : vector<64x128xf32>
    %6 = vector.extract_strided_slice %5 {offsets = [0, 0], sizes = [64, 3], strides = [1, 1]} : vector<64x128xf32> to vector<64x3xf32>
    %c0_5 = arith.constant 0 : index
    %c0_6 = arith.constant 0 : index
    %7 = vector.load %arg4[%c0_5, %c0_6] : memref<64x3xf32, #tpu.memory_space<vmem>>, vector<64x3xf32>
    tpu.vector_store %arg4[%c0_5, %c0_6], %6 {strides = array<i32>} : memref<64x3xf32, #tpu.memory_space<vmem>>, vector<64x3xf32>,
    return
  }
  func.func @transform_0(%arg0: i32) -> (i32, i32) {
    %c0_i32 = arith.constant 0 : i32
    %c0_i32_0 = arith.constant 0 : i32
    return %arg0, %c0_i32 : i32, i32
  }
  func.func @transform_1(%arg0: i32) -> (i32, i32) {
    %c0_i32 = arith.constant 0 : i32
    %c0_i32_0 = arith.constant 0 : i32
    %c0_i32_1 = arith.constant 0 : i32
    return %c0_i32, %c0_i32_0 : i32, i32
  }
  func.func @transform_2(%arg0: i32) -> (i32, i32) {
    %c0_i32 = arith.constant 0 : i32
    %c0_i32_0 = arith.constant 0 : i32
    %c0_i32_1 = arith.constant 0 : i32
    return %c0_i32, %c0_i32_0 : i32, i32
  }
  func.func @transform_3(%arg0: i32) -> (i32, i32) {
    %c0_i32 = arith.constant 0 : i32
    %c0_i32_0 = arith.constant 0 : i32
    return %arg0, %c0_i32 : i32, i32
  }
}

</mosaic_0001>

<llo_original>
// kernel: neural_net_forward.1
$region0: #{neural_net_forward.1}
  #allocation0 [shape = 'u32[]', space=smem, size = 0x4, offset = 0x4, fixed_abs, tag = 'smem constant byte address 0x4 - core index']
  #allocation1 [shape = 'u32[144,128]{1,0:T(1,128)}', space=vmem, size = 0x12000, scoped, tag = 'internal scratch']
  %s0 = inlined_call_operand.vmem [shape: f32[64,22], index: 0, kind: input, shape index: {}]
  %s1 = inlined_call_operand.vmem [shape: f32[22,128], index: 1, kind: input, shape index: {}]
  %s2 = inlined_call_operand.vmem [shape: f32[1,128], index: 2, kind: input, shape index: {}]
  %s3 = inlined_call_operand.vmem [shape: f32[64,3], index: 3, kind: output, shape index: {}]
  %s4 = sld [smem:[#allocation0]]
  $region22: #{neural_net_forward.1} parent=0
    _
  %s6 = ssub.s32 1, %s4
  %s7 = scalar_select 0, %s6, %s4
  // Predicated region
  $region2: #{neural_net_forward.1} parent=0 // pred_check
    _
  $region3: #{neural_net_forward.1} parent=0 // pred_check_branch
    %9 = sbr.rel (0) target = $region5
  $region4: #{neural_net_forward.1} parent=0 // pred_region
    _
  $region5: #{neural_net_forward.1} parent=0 // pred_fallthru
    _
  // Predicated region
  $region6: #{neural_net_forward.1} parent=0 // pred_check
    _
  $region7: #{neural_net_forward.1} parent=0 // pred_check_branch
    %11 = sbr.rel (0) target = $region9
  $region8: #{neural_net_forward.1} parent=0 // pred_region
    _
  $region9: #{neural_net_forward.1} parent=0 // pred_fallthru
    _
  // Predicated region
  $region10: #{neural_net_forward.1} parent=0 // pred_check
    _
  $region11: #{neural_net_forward.1} parent=0 // pred_check_branch
    %13 = sbr.rel (0) target = $region13
  $region12: #{neural_net_forward.1} parent=0 // pred_region
    _
  $region13: #{neural_net_forward.1} parent=0 // pred_fallthru
    _
  %v14 = vld [vmem:[%s0] sm:$0xff]
  %v15 = vld [vmem:[%s0 + $0x8] sm:$0xff]
  %v16 = vld [vmem:[%s0 + $0x10] sm:$0xff]
  %v17 = vld [vmem:[%s0 + $0x18] sm:$0xff]
  %v18 = vld [vmem:[%s0 + $0x20] sm:$0xff]
  %v19 = vld [vmem:[%s0 + $0x28] sm:$0xff]
  %v20 = vld [vmem:[%s0 + $0x30] sm:$0xff]
  %v21 = vld [vmem:[%s0 + $0x38] sm:$0xff]
  %v22 = vld [vmem:[%s1] sm:$0xff]
  %v23 = vld [vmem:[%s1 + $0x8] sm:$0xff]
  %v24 = vld [vmem:[%s1 + $0x10] sm:$0x3f]
  %v25 = vld [vmem:[%s2] sm:$0x1]
  %v27 = vlaneseq
  %v28 = vshrl.u32 %v27, 7
  %v29 = vsub.s32 0, %v28
  %v30 = vrot.slane %v25, %v29
  %vm32 = vcmask 179200
  %v34 = vsel %vm32, %v14, 0
  %v37 = vsel %vm32, %v15, 0
  %v40 = vsel %vm32, %v16, 0
  %v43 = vsel %vm32, %v17, 0
  %v46 = vsel %vm32, %v18, 0
  %v49 = vsel %vm32, %v19, 0
  %v52 = vsel %vm32, %v20, 0
  %v55 = vsel %vm32, %v21, 0
  %vm57 = vcmask 1045504
  %v59 = vsel %vm57, %v24, 0
  %61 = vmatprep.subr.mxu0 0.0
  %62 = vmatpush1.msra.mxu0 %v22
  %63 = vmatprep.subr.mxu0 0.0
  %64 = vmatpush1.msra.mxu0 %v23
  %65 = vmatprep.subr.mxu0 0.0
  %66 = vmatpush1.msra.mxu0 %v59
  %67 = vmatprep.subr.mxu0 0.0
  %68 = vmatpush1.msra.mxu0 0.0
  %69 = vmatprep.subr.mxu0 0.0
  %70 = vmatpush1.msra.mxu0 0.0
  %71 = vmatprep.subr.mxu0 0.0
  %72 = vmatpush1.msra.mxu0 0.0
  %73 = vmatprep.subr.mxu0 0.0
  %74 = vmatpush1.msra.mxu0 0.0
  %75 = vmatprep.subr.mxu0 0.0
  %76 = vmatpush1.msra.mxu0 0.0
  %77 = vmatprep.subr.mxu0 0.0
  %78 = vmatpush1.msra.mxu0 0.0
  %79 = vmatprep.subr.mxu0 0.0
  %80 = vmatpush1.msra.mxu0 0.0
  %81 = vmatprep.subr.mxu0 0.0
  %82 = vmatpush1.msra.mxu0 0.0
  %83 = vmatprep.subr.mxu0 0.0
  %84 = vmatpush1.msra.mxu0 0.0
  %85 = vmatprep.subr.mxu0 0.0
  %86 = vmatpush1.msra.mxu0 0.0
  %87 = vmatprep.subr.mxu0 0.0
  %88 = vmatpush1.msra.mxu0 0.0
  %89 = vmatprep.subr.mxu0 0.0
  %90 = vmatpush1.msra.mxu0 0.0
  %91 = vmatprep.subr.mxu0 0.0
  %92 = vmatpush1.msra.mxu0 0.0
  %93 = vmatprep.subr.mxu0 0.0
  %94 = vmatpush1.msra.mxu0 0.0
  %95 = vmatprep.subr.mxu0 0.0
  %96 = vmatpush1.msra.mxu0 0.0
  %97 = vmatprep.subr.mxu0 0.0
  %98 = vmatpush1.msra.mxu0 0.0
  %99 = vmatprep.subr.mxu0 0.0
  %100 = vmatpush1.msra.mxu0 0.0
  %101 = vmatprep.subr.mxu0 0.0
  %102 = vmatpush1.msra.mxu0 0.0
  %103 = vmatprep.subr.mxu0 0.0
  %104 = vmatpush1.msra.mxu0 0.0
  %105 = vmatprep.subr.mxu0 0.0
  %106 = vmatpush1.msra.mxu0 0.0
  %107 = vmatprep.subr.mxu0 0.0
  %108 = vmatpush1.msra.mxu0 0.0
  %109 = vmatprep.subr.mxu0 0.0
  %110 = vmatpush1.msra.mxu0 0.0
  %111 = vmatprep.subr.mxu0 0.0
  %112 = vmatpush1.msra.mxu0 0.0
  %113 = vmatprep.subr.mxu0 0.0
  %114 = vmatpush1.msra.mxu0 0.0
  %115 = vmatprep.subr.mxu0 0.0
  %116 = vmatpush1.msra.mxu0 0.0
  %117 = vmatprep.subr.mxu0 0.0
  %118 = vmatpush1.msra.mxu0 0.0
  %119 = vmatprep.subr.mxu0 0.0
  %120 = vmatpush1.msra.mxu0 0.0
  %121 = vmatprep.subr.mxu0 0.0
  %122 = vmatpush1.msra.mxu0 0.0
  %123 = vmatprep.subr.mxu0 0.0
  %124 = vmatpush1.msra.mxu0 0.0
  %125 = vmatprep.mubr.f32.mxu0 0.0
  %126 = vmatmul.mubr.f32.gmra.mrb[0].mxu0 %v34
  %v127 = vpop.f32.mrb[0].mxu0
  %v128 = vadd.f32 %v30, %v127
  %v129 = vpop.f32.mrb[0].mxu0
  %130 = vmatprep.mubr.f32.mxu0 0.0
  %131 = vmatmul.mubr.f32.gmra.mrb[0].mxu0 %v37
  %v132 = vpop.f32.mrb[0].mxu0
  %v133 = vadd.f32 %v30, %v132
  %v134 = vpop.f32.mrb[0].mxu0
  %135 = vmatprep.mubr.f32.mxu0 0.0
  %136 = vmatmul.mubr.f32.gmra.mrb[0].mxu0 %v40
  %v137 = vpop.f32.mrb[0].mxu0
  %v138 = vadd.f32 %v30, %v137
  %v139 = vpop.f32.mrb[0].mxu0
  %140 = vmatprep.mubr.f32.mxu0 0.0
  %141 = vmatmul.mubr.f32.gmra.mrb[0].mxu0 %v43
  %v142 = vpop.f32.mrb[0].mxu0
  %v143 = vadd.f32 %v30, %v142
  %v144 = vpop.f32.mrb[0].mxu0
  %145 = vmatprep.mubr.f32.mxu0 0.0
  %146 = vmatmul.mubr.f32.gmra.mrb[0].mxu0 %v46
  %v147 = vpop.f32.mrb[0].mxu0
  %v148 = vadd.f32 %v30, %v147
  %v149 = vpop.f32.mrb[0].mxu0
  %150 = vmatprep.mubr.f32.mxu0 0.0
  %151 = vmatmul.mubr.f32.gmra.mrb[0].mxu0 %v49
  %v152 = vpop.f32.mrb[0].mxu0
  %v153 = vadd.f32 %v30, %v152
  %v154 = vpop.f32.mrb[0].mxu0
  %155 = vmatprep.mubr.f32.mxu0 0.0
  %156 = vmatmul.mubr.f32.gmra.mrb[0].mxu0 %v52
  %v157 = vpop.f32.mrb[0].mxu0
  %v158 = vadd.f32 %v30, %v157
  %v159 = vpop.f32.mrb[0].mxu0
  %160 = vmatprep.mubr.f32.mxu0 0.0
  %161 = vmatmul.mubr.f32.gmra.mrb[0].mxu0 %v55
  %v162 = vpop.f32.mrb[0].mxu0
  %v163 = vadd.f32 %v30, %v162
  %v164 = vpop.f32.mrb[0].mxu0
  %165 = vdwg.mxu0
  %vm166 = vcmask 23552
  %167 = vst.msk [vmem:[%s3] sm:$0xff] %vm166, %v128
  %168 = vst.msk [vmem:[%s3 + $0x8] sm:$0xff] %vm166, %v133
  %169 = vst.msk [vmem:[%s3 + $0x10] sm:$0xff] %vm166, %v138
  %170 = vst.msk [vmem:[%s3 + $0x18] sm:$0xff] %vm166, %v143
  %171 = vst.msk [vmem:[%s3 + $0x20] sm:$0xff] %vm166, %v148
  %172 = vst.msk [vmem:[%s3 + $0x28] sm:$0xff] %vm166, %v153
  %173 = vst.msk [vmem:[%s3 + $0x30] sm:$0xff] %vm166, %v158
  %174 = vst.msk [vmem:[%s3 + $0x38] sm:$0xff] %vm166, %v163
  // Predicated region
  $region14: #{neural_net_forward.1} parent=0 // pred_check
    _
  $region15: #{neural_net_forward.1} parent=0 // pred_check_branch
    %176 = sbr.rel (0) target = $region17
  $region16: #{neural_net_forward.1} parent=0 // pred_region
    _
  $region17: #{neural_net_forward.1} parent=0 // pred_fallthru
    _
  // Predicated region
  $region18: #{neural_net_forward.1} parent=0 // pred_check
    _
  $region19: #{neural_net_forward.1} parent=0 // pred_check_branch
    %178 = sbr.rel (0) target = $region21
  $region20: #{neural_net_forward.1} parent=0 // pred_region
    _
  $region21: #{neural_net_forward.1} parent=0 // pred_fallthru
    _

</llo_original>
